<compile_context>
chip_gen: v6e
topology: v6e:2x2x1
jax: 0.10.0
libtpu: 0.0.40
codegen_flags: <defaults>
</compile_context>

<pallas_src>
import jax
import jax.numpy as jnp
from jax.experimental import pallas as pl
from jax.experimental.pallas import tpu as pltpu

LANES = 128


def latent_embed_kernel(lut_ref, idx_ref, out_ref):
    """Per-token lookup of the folded MLP LUT via a binary select tree.

    lut_ref : (Vp,) float32 in SMEM, Vp = power of two (resident, tiny)
    idx_ref : (bm, 128) int32, lane-dense token indices
    out_ref : (bm, 128) float32
    """
    v_pow2 = lut_ref.shape[0]
    n_bits = v_pow2.bit_length() - 1

    idx = idx_ref[...]
    # Bit masks of the index (one cmp chain per bit), computed once.
    bits = [(idx & (1 << b)) != 0 for b in range(n_bits)]
    # Hoist all SMEM scalar reads so each broadcast happens exactly once.
    leaves = [lut_ref[v] for v in range(v_pow2)]

    # Depth-first binary select tree: V-1 selects, ~depth live temporaries.
    def tree(lo, size, level):
        if size == 1:
            return leaves[lo]
        half = size // 2
        left = tree(lo, half, level - 1)
        right = tree(lo + half, half, level - 1)
        return jnp.where(bits[level], right, left)

    out_ref[...] = tree(0, v_pow2, n_bits - 1)


def _choose_block_rows(rows, max_block_rows):
    """Pick (block_rows, num_blocks): big tiles, even grid for v7x's 2 TCs."""
    num_blocks = pl.cdiv(rows, max_block_rows)
    if rows >= 1024:                      # large enough to be worth splitting
        num_blocks = max(num_blocks, 2)
    if num_blocks > 1 and num_blocks % 2 == 1:
        num_blocks += 1                   # balanced split across 2 TensorCores
    if num_blocks == 1:
        return rows, 1                    # full-extent block (any row count ok)
    block_rows = ((pl.cdiv(rows, num_blocks) + 7) // 8) * 8   # sublane multiple
    num_blocks = pl.cdiv(rows, block_rows)
    return block_rows, num_blocks


def latent_embed_forward(inputs, emb_table, w1, b1, w2, b2, *, max_block_rows=2048):
    """inputs: integer array of any shape. Returns inputs.shape + (1,) float32."""
    orig_shape = inputs.shape
    flat = jnp.asarray(inputs, jnp.int32).reshape(-1)
    n = flat.shape[0]

    # Fold embedding + linear1 + ReLU + linear2 + ReLU into a per-vocab LUT.
    # Tiny (V x 3) math, done once, in true fp32 (HIGHEST precision).
    hi = jax.lax.Precision.HIGHEST
    emb = jnp.asarray(emb_table, jnp.float32)                               # (V, 3)
    h1 = jnp.maximum(
        jnp.einsum('vd,hd->vh', emb, jnp.asarray(w1, jnp.float32), precision=hi)
        + jnp.asarray(b1, jnp.float32), 0.0)                                # (V, 2)
    lut = jnp.maximum(
        jnp.einsum('vh,oh->vo', h1, jnp.asarray(w2, jnp.float32), precision=hi)
        + jnp.asarray(b2, jnp.float32), 0.0)[:, 0]                          # (V,)

    v = lut.shape[0]
    v_pow2 = max(2, pl.next_power_of_2(v))
    if v_pow2 != v:
        lut = jnp.pad(lut, (0, v_pow2 - v))   # padded entries -> 0.0

    # Lane-dense layout: (rows, 128) over the flattened token axis.
    # Copy-free when n is a multiple of 128; otherwise pad only to the next
    # 128 multiple (never to block granularity) and slice only the tail.
    rows = pl.cdiv(n, LANES)
    n_padded = rows * LANES
    if n_padded != n:
        flat = jnp.pad(flat, (0, n_padded - n))
    idx2d = flat.reshape(rows, LANES)

    block_rows, num_blocks = _choose_block_rows(rows, max_block_rows)

    out2d = pl.pallas_call(
        latent_embed_kernel,
        out_shape=jax.ShapeDtypeStruct((rows, LANES), jnp.float32),
        grid=(num_blocks,),
        in_specs=[
            # Folded LUT: whole (Vp,) array resident in SMEM.
            pl.BlockSpec(memory_space=pltpu.MemorySpace.SMEM),
            # Token indices: (block_rows, 128) tiles, auto double-buffered,
            # partial last block handled by Pallas.
            pl.BlockSpec((block_rows, LANES), lambda i: (i, 0)),
        ],
        out_specs=pl.BlockSpec((block_rows, LANES), lambda i: (i, 0)),
        compiler_params=pltpu.CompilerParams(
            dimension_semantics=("parallel",),
            vmem_limit_bytes=32 * 1024 * 1024),
        cost_estimate=pl.CostEstimate(
            flops=0, transcendentals=0, bytes_accessed=8 * n_padded),
    )(lut, idx2d)

    out_flat = out2d.reshape(-1)
    if n != n_padded:
        out_flat = out_flat[:n]
    return out_flat.reshape(orig_shape + (1,))


if __name__ == "__main__":
    key = jax.random.PRNGKey(0)
    k_emb, k_w1, k_b1, k_w2, k_b2, k_idx1, k_idx2, k_idx3 = jax.random.split(key, 8)

    vocab_size = 16
    embedding_dim = 3   # linear1 is 3 -> 2, so embedding_dim must be 3

    emb_table = jax.random.normal(k_emb, (vocab_size, embedding_dim), jnp.float32)
    w1 = jax.random.normal(k_w1, (2, 3), jnp.float32) * 0.5   # nn.Linear(3, 2).weight
    b1 = jax.random.normal(k_b1, (2,), jnp.float32) * 0.5     # nn.Linear(3, 2).bias
    w2 = jax.random.normal(k_w2, (1, 2), jnp.float32) * 0.5   # nn.Linear(2, 1).weight
    b2 = jax.random.normal(k_b2, (1,), jnp.float32) * 0.5     # nn.Linear(2, 1).bias

    hi = jax.lax.Precision.HIGHEST

    def reference(inputs):
        embeds = jnp.take(emb_table, inputs, axis=0)                         # (..., 3)
        h1 = jnp.maximum(
            jnp.einsum('...d,hd->...h', embeds, w1, precision=hi) + b1, 0.0)  # (..., 2)
        return jnp.maximum(
            jnp.einsum('...h,oh->...o', h1, w2, precision=hi) + b2, 0.0)      # (..., 1)

    # Small shape, as the module would typically see (single block, pad path).
    inputs_small = jax.random.randint(k_idx1, (2, 4), 0, vocab_size, jnp.int32)
    out_small = jax.block_until_ready(
        latent_embed_forward(inputs_small, emb_table, w1, b1, w2, b2))
    assert out_small.shape == (2, 4, 1), out_small.shape
    assert jnp.allclose(out_small, reference(inputs_small), atol=1e-5, rtol=1e-5)

    # 128-aligned shape: exercises the fully copy-free wrapper path.
    inputs_aligned = jax.random.randint(k_idx3, (128, 128), 0, vocab_size, jnp.int32)
    out_aligned = jax.block_until_ready(
        latent_embed_forward(inputs_aligned, emb_table, w1, b1, w2, b2))
    assert out_aligned.shape == (128, 128, 1), out_aligned.shape
    assert jnp.allclose(out_aligned, reference(inputs_aligned), atol=1e-5, rtol=1e-5)

    # Larger unaligned shape: multi-step even grid (2 x 704-row blocks) with a
    # partial last block and minimal pad/slice.
    inputs_big = jax.random.randint(k_idx2, (300, 600), 0, vocab_size, jnp.int32)
    out_big = jax.block_until_ready(
        latent_embed_forward(inputs_big, emb_table, w1, b1, w2, b2))
    assert out_big.shape == (300, 600, 1), out_big.shape
    assert jnp.allclose(out_big, reference(inputs_big), atol=1e-5, rtol=1e-5)

    print("KERNEL_OK")
</pallas_src>

<mosaic_0001>
module attributes {stable_mosaic.version = 11 : i64} {
  func.func @latent_embed_kernel(%arg0: i32, %arg1: memref<16xf32, #tpu.memory_space<smem>>, %arg2: memref<1x128xi32, #tpu.memory_space<vmem>>, %arg3: memref<1x128xf32, #tpu.memory_space<vmem>>) attributes {dimension_semantics = [#tpu.dimension_semantics<parallel>], iteration_bounds = array<i64: 1>, scalar_prefetch = 0 : i64, scratch_operands = 0 : i64, tpu.core_type = #tpu.core_type<tc>, window_params = [{transform_indices = @transform_0, window_bounds = array<i64: 16>}, {transform_indices = @transform_1, window_bounds = array<i64: 1, 128>}, {transform_indices = @transform_2, window_bounds = array<i64: 1, 128>}]} {
    %c0 = arith.constant 0 : index
    %c0_0 = arith.constant 0 : index
    %0 = vector.load %arg2[%c0, %c0_0] : memref<1x128xi32, #tpu.memory_space<vmem>>, vector<1x128xi32>
    %c1_i32 = arith.constant 1 : i32
    %1 = vector.broadcast %c1_i32 : i32 to vector<1x128xi32>
    %2 = arith.andi %0, %1 : vector<1x128xi32>
    %c0_i32 = arith.constant 0 : i32
    %3 = vector.broadcast %c0_i32 : i32 to vector<1x128xi32>
    %4 = arith.cmpi ne, %2, %3 : vector<1x128xi32>
    %c2_i32 = arith.constant 2 : i32
    %5 = vector.broadcast %c2_i32 : i32 to vector<1x128xi32>
    %6 = arith.andi %0, %5 : vector<1x128xi32>
    %c0_i32_1 = arith.constant 0 : i32
    %7 = vector.broadcast %c0_i32_1 : i32 to vector<1x128xi32>
    %8 = arith.cmpi ne, %6, %7 : vector<1x128xi32>
    %c4_i32 = arith.constant 4 : i32
    %9 = vector.broadcast %c4_i32 : i32 to vector<1x128xi32>
    %10 = arith.andi %0, %9 : vector<1x128xi32>
    %c0_i32_2 = arith.constant 0 : i32
    %11 = vector.broadcast %c0_i32_2 : i32 to vector<1x128xi32>
    %12 = arith.cmpi ne, %10, %11 : vector<1x128xi32>
    %c8_i32 = arith.constant 8 : i32
    %13 = vector.broadcast %c8_i32 : i32 to vector<1x128xi32>
    %14 = arith.andi %0, %13 : vector<1x128xi32>
    %c0_i32_3 = arith.constant 0 : i32
    %15 = vector.broadcast %c0_i32_3 : i32 to vector<1x128xi32>
    %16 = arith.cmpi ne, %14, %15 : vector<1x128xi32>
    %c0_4 = arith.constant 0 : index
    %17 = memref.load %arg1[%c0_4] : memref<16xf32, #tpu.memory_space<smem>>
    %c1 = arith.constant 1 : index
    %18 = memref.load %arg1[%c1] : memref<16xf32, #tpu.memory_space<smem>>
    %c2 = arith.constant 2 : index
    %19 = memref.load %arg1[%c2] : memref<16xf32, #tpu.memory_space<smem>>
    %c3 = arith.constant 3 : index
    %20 = memref.load %arg1[%c3] : memref<16xf32, #tpu.memory_space<smem>>
    %c4 = arith.constant 4 : index
    %21 = memref.load %arg1[%c4] : memref<16xf32, #tpu.memory_space<smem>>
    %c5 = arith.constant 5 : index
    %22 = memref.load %arg1[%c5] : memref<16xf32, #tpu.memory_space<smem>>
    %c6 = arith.constant 6 : index
    %23 = memref.load %arg1[%c6] : memref<16xf32, #tpu.memory_space<smem>>
    %c7 = arith.constant 7 : index
    %24 = memref.load %arg1[%c7] : memref<16xf32, #tpu.memory_space<smem>>
    %c8 = arith.constant 8 : index
    %25 = memref.load %arg1[%c8] : memref<16xf32, #tpu.memory_space<smem>>
    %c9 = arith.constant 9 : index
    %26 = memref.load %arg1[%c9] : memref<16xf32, #tpu.memory_space<smem>>
    %c10 = arith.constant 10 : index
    %27 = memref.load %arg1[%c10] : memref<16xf32, #tpu.memory_space<smem>>
    %c11 = arith.constant 11 : index
    %28 = memref.load %arg1[%c11] : memref<16xf32, #tpu.memory_space<smem>>
    %c12 = arith.constant 12 : index
    %29 = memref.load %arg1[%c12] : memref<16xf32, #tpu.memory_space<smem>>
    %c13 = arith.constant 13 : index
    %30 = memref.load %arg1[%c13] : memref<16xf32, #tpu.memory_space<smem>>
    %c14 = arith.constant 14 : index
    %31 = memref.load %arg1[%c14] : memref<16xf32, #tpu.memory_space<smem>>
    %c15 = arith.constant 15 : index
    %32 = memref.load %arg1[%c15] : memref<16xf32, #tpu.memory_space<smem>>
    %33 = vector.broadcast %18 : f32 to vector<1x128xf32>
    %34 = vector.broadcast %17 : f32 to vector<1x128xf32>
    %35 = arith.select %4, %33, %34 : vector<1x128xi1>, vector<1x128xf32>
    %36 = vector.broadcast %20 : f32 to vector<1x128xf32>
    %37 = vector.broadcast %19 : f32 to vector<1x128xf32>
    %38 = arith.select %4, %36, %37 : vector<1x128xi1>, vector<1x128xf32>
    %39 = arith.select %8, %38, %35 : vector<1x128xi1>, vector<1x128xf32>
    %40 = vector.broadcast %22 : f32 to vector<1x128xf32>
    %41 = vector.broadcast %21 : f32 to vector<1x128xf32>
    %42 = arith.select %4, %40, %41 : vector<1x128xi1>, vector<1x128xf32>
    %43 = vector.broadcast %24 : f32 to vector<1x128xf32>
    %44 = vector.broadcast %23 : f32 to vector<1x128xf32>
    %45 = arith.select %4, %43, %44 : vector<1x128xi1>, vector<1x128xf32>
    %46 = arith.select %8, %45, %42 : vector<1x128xi1>, vector<1x128xf32>
    %47 = arith.select %12, %46, %39 : vector<1x128xi1>, vector<1x128xf32>
    %48 = vector.broadcast %26 : f32 to vector<1x128xf32>
    %49 = vector.broadcast %25 : f32 to vector<1x128xf32>
    %50 = arith.select %4, %48, %49 : vector<1x128xi1>, vector<1x128xf32>
    %51 = vector.broadcast %28 : f32 to vector<1x128xf32>
    %52 = vector.broadcast %27 : f32 to vector<1x128xf32>
    %53 = arith.select %4, %51, %52 : vector<1x128xi1>, vector<1x128xf32>
    %54 = arith.select %8, %53, %50 : vector<1x128xi1>, vector<1x128xf32>
    %55 = vector.broadcast %30 : f32 to vector<1x128xf32>
    %56 = vector.broadcast %29 : f32 to vector<1x128xf32>
    %57 = arith.select %4, %55, %56 : vector<1x128xi1>, vector<1x128xf32>
    %58 = vector.broadcast %32 : f32 to vector<1x128xf32>
    %59 = vector.broadcast %31 : f32 to vector<1x128xf32>
    %60 = arith.select %4, %58, %59 : vector<1x128xi1>, vector<1x128xf32>
    %61 = arith.select %8, %60, %57 : vector<1x128xi1>, vector<1x128xf32>
    %62 = arith.select %12, %61, %54 : vector<1x128xi1>, vector<1x128xf32>
    %63 = arith.select %16, %62, %47 : vector<1x128xi1>, vector<1x128xf32>
    %c0_5 = arith.constant 0 : index
    %c0_6 = arith.constant 0 : index
    %64 = vector.load %arg3[%c0_5, %c0_6] : memref<1x128xf32, #tpu.memory_space<vmem>>, vector<1x128xf32>
    tpu.vector_store %arg3[%c0_5, %c0_6], %63 {strides = array<i32>} : memref<1x128xf32, #tpu.memory_space<vmem>>, vector<1x128xf32>,
    return
  }
  func.func @transform_0(%arg0: i32) -> i32 {
    %c0_i32 = arith.constant 0 : i32
    %c0_i32_0 = arith.constant 0 : i32
    return %c0_i32 : i32
  }
  func.func @transform_1(%arg0: i32) -> (i32, i32) {
    %c0_i32 = arith.constant 0 : i32
    %c0_i32_0 = arith.constant 0 : i32
    return %arg0, %c0_i32 : i32, i32
  }
  func.func @transform_2(%arg0: i32) -> (i32, i32) {
    %c0_i32 = arith.constant 0 : i32
    %c0_i32_0 = arith.constant 0 : i32
    return %arg0, %c0_i32 : i32, i32
  }
}

</mosaic_0001>

<llo_original>
// kernel: tpu_custom_call.1
$region0: #{tpu_custom_call.1}
  #allocation0 [shape = 'u32[]', space=smem, size = 0x4, offset = 0x4, fixed_abs, tag = 'smem constant byte address 0x4 - core index']
  #allocation1 [shape = 'u32[144,128]{1,0:T(1,128)}', space=vmem, size = 0x12000, scoped, tag = 'internal scratch']
  %s0 = inlined_call_operand.hbm [shape: f32[16], index: 0, kind: input, shape index: {}]
  %s1 = inlined_call_operand.vmem [shape: s32[1,128], index: 1, kind: input, shape index: {}]
  %s2 = inlined_call_operand.hbm [shape: f32[1,128], index: 2, kind: output, shape index: {}]
  %s3 = sld [smem:[#allocation0]]
  $region22: #{tpu_custom_call.1} parent=0
    _
  %s5 = ssub.s32 1, %s3
  %s6 = scalar_select 0, %s5, %s3
  $region1: #{tpu_custom_call.1} parent=0
    #allocation2 [shape = 'u8[512]{0}', space=smem, size = 0x200, scoped, tag = 'input window, operand 0, single buffered']
    #allocation3 [shape = 's32[1]{0}', space=sflag, size = 0x4, scoped, tag = 'scoped memory for tpu_custom_call.1']
    #allocation4 [shape = 's32[1]{0}', space=sflag, size = 0x4, scoped, tag = 'scoped memory for tpu_custom_call.1']
    #allocation5 [shape = 'u8[512]{0}', space=vmem, size = 0x400, scoped, tag = 'output window, operand 0, single buffered']
    %7 = vsyncpa [#allocation4], 0
    %8 = vsyncpa [#allocation3], 0
    // Predicated region
    $region2: #{tpu_custom_call.1} parent=1 // pred_check
      _
    $region3: #{tpu_custom_call.1} parent=1 // pred_check_branch
      %10 = sbr.rel (0) target = $region5
    $region4: #{tpu_custom_call.1} parent=1 // pred_region
      %s12 = ssub.s32 16, 16
      %13 = vsyncadd [#allocation4], %s12
      %16 = dma.hbm_to_smem %s0, 16, [#allocation2], [#allocation4]
    $region5: #{tpu_custom_call.1} parent=1 // pred_fallthru
      _
    // Predicated region
    $region6: #{tpu_custom_call.1} parent=1 // pred_check
      _
    $region7: #{tpu_custom_call.1} parent=1 // pred_check_branch
      %18 = sbr.rel (0) target = $region9
    $region8: #{tpu_custom_call.1} parent=1 // pred_region
      _
    $region9: #{tpu_custom_call.1} parent=1 // pred_fallthru
      _
    // Predicated region
    $region10: #{tpu_custom_call.1} parent=1 // pred_check
      _
    $region11: #{tpu_custom_call.1} parent=1 // pred_check_branch
      %20 = sbr.rel (0) target = $region13
    $region12: #{tpu_custom_call.1} parent=1 // pred_region
      %21 = dma.done [#allocation4], 16
    $region13: #{tpu_custom_call.1} parent=1 // pred_fallthru
      _
    %22 = sfence
    %v23 = vld [vmem:[%s1] sm:$0x1]
    %v24 = vand.u32 %v23, 1
    %vm25 = vcmp.ne.s32.totalorder %v24, 0
    %v26 = vand.u32 %v23, 2
    %vm27 = vcmp.ne.s32.totalorder %v26, 0
    %v28 = vand.u32 %v23, 4
    %vm29 = vcmp.ne.s32.totalorder %v28, 0
    %v30 = vand.u32 %v23, 8
    %vm31 = vcmp.ne.s32.totalorder %v30, 0
    %s32 = sld [smem:[#allocation2]]
    %s33 = sld [smem:[#allocation2 + $0x1]]
    %s34 = sld [smem:[#allocation2 + $0x2]]
    %s35 = sld [smem:[#allocation2 + $0x3]]
    %s36 = sld [smem:[#allocation2 + $0x4]]
    %s37 = sld [smem:[#allocation2 + $0x5]]
    %s38 = sld [smem:[#allocation2 + $0x6]]
    %s39 = sld [smem:[#allocation2 + $0x7]]
    %s40 = sld [smem:[#allocation2 + $0x8]]
    %s41 = sld [smem:[#allocation2 + $0x9]]
    %s42 = sld [smem:[#allocation2 + $0xa]]
    %s43 = sld [smem:[#allocation2 + $0xb]]
    %s44 = sld [smem:[#allocation2 + $0xc]]
    %s45 = sld [smem:[#allocation2 + $0xd]]
    %s46 = sld [smem:[#allocation2 + $0xe]]
    %s47 = sld [smem:[#allocation2 + $0xf]]
    %v48 = vstv %s33
    %v49 = vstv %s32
    %v50 = vsel %vm25, %v48, %v49
    %v51 = vstv %s35
    %v52 = vstv %s34
    %v53 = vsel %vm25, %v51, %v52
    %v54 = vsel %vm27, %v53, %v50
    %v55 = vstv %s37
    %v56 = vstv %s36
    %v57 = vsel %vm25, %v55, %v56
    %v58 = vstv %s39
    %v59 = vstv %s38
    %v60 = vsel %vm25, %v58, %v59
    %v61 = vsel %vm27, %v60, %v57
    %v62 = vsel %vm29, %v61, %v54
    %v63 = vstv %s41
    %v64 = vstv %s40
    %v65 = vsel %vm25, %v63, %v64
    %v66 = vstv %s43
    %v67 = vstv %s42
    %v68 = vsel %vm25, %v66, %v67
    %v69 = vsel %vm27, %v68, %v65
    %v70 = vstv %s45
    %v71 = vstv %s44
    %v72 = vsel %vm25, %v70, %v71
    %v73 = vstv %s47
    %v74 = vstv %s46
    %v75 = vsel %vm25, %v73, %v74
    %v76 = vsel %vm27, %v75, %v72
    %v77 = vsel %vm29, %v76, %v69
    %v78 = vsel %vm31, %v77, %v62
    %79 = vst [vmem:[#allocation5] sm:$0x1] %v78
    // Predicated region
    $region14: #{tpu_custom_call.1} parent=1 // pred_check
      _
    $region15: #{tpu_custom_call.1} parent=1 // pred_check_branch
      %81 = sbr.rel (0) target = $region17
    $region16: #{tpu_custom_call.1} parent=1 // pred_region
      %s83 = ssub.s32 16, 16
      %84 = vsyncadd [#allocation3], %s83
      %s86 = sshll.u32 [#allocation5], 4
      %s87 = int_to_ptr.vmem [resolvable:$true] %s86
      %89 = dma.vmem_to_hbm [thread:$0]  %s87, 16, %s2, [#allocation3]
    $region17: #{tpu_custom_call.1} parent=1 // pred_fallthru
      _
    // Predicated region
    $region18: #{tpu_custom_call.1} parent=1 // pred_check
      _
    $region19: #{tpu_custom_call.1} parent=1 // pred_check_branch
      %91 = sbr.rel (0) target = $region21
    $region20: #{tpu_custom_call.1} parent=1 // pred_region
      %92 = dma.done [#allocation3], 16
    $region21: #{tpu_custom_call.1} parent=1 // pred_fallthru
      _
    %93 = vsyncpa [#allocation3], 1
    %94 = vsyncpa [#allocation4], 1

</llo_original>
